<compile_context>
chip_gen: v5e
topology: v5e:2x2
jax: 0.10.0
libtpu: 0.0.40
codegen_flags: <defaults>
</compile_context>

<pallas_src>
import jax
import jax.numpy as jnp
from jax.experimental import pallas as pl
from jax.experimental.pallas import tpu as pltpu


def _round_up(x, m):
    return ((x + m - 1) // m) * m


def cls_pooler_kernel(cls_ref, w_ref, b_ref, o_ref):
    # cls_ref: (tm, d_in) tile of CLS vectors, w_ref: (d_in, d_out), b_ref: (1, d_out).
    # Feed the MXU in the operands' native dtype; accumulate in f32.
    y = jnp.dot(cls_ref[...], w_ref[...], preferred_element_type=jnp.float32)
    y = y + b_ref[...].astype(jnp.float32)
    o_ref[...] = jnp.tanh(y).astype(o_ref.dtype)


def cls_pooler_pallas(last_hidden_state, w_pool, b_pool, *, tm=256):
    """last_hidden_state: (B, S, D_in). Returns pooled_output.unsqueeze(1): (B, 1, D_out)."""
    B, S, d_in = last_hidden_state.shape
    d_out = w_pool.shape[1]

    # CLS pooling: only the first token of every sequence is transformed.
    cls = last_hidden_state[:, 0, :]                      # (B, d_in)

    # Row tiling: 8-aligned, no larger than the (padded) batch, default up to 256.
    tm = max(8, min(_round_up(tm, 8), _round_up(B, 8)))
    n_pad = _round_up(B, tm)
    if n_pad != B:
        cls = jnp.pad(cls, ((0, n_pad - B), (0, 0)))      # padded rows are sliced off below

    # Explicit VMEM budget (double-buffered I/O tiles + weight/bias residency), v7x-safe cap.
    io_bytes = 2 * tm * (d_in * cls.dtype.itemsize + d_out * last_hidden_state.dtype.itemsize)
    wb_bytes = 2 * (d_in * d_out + d_out) * w_pool.dtype.itemsize
    vmem_limit = min(64 << 20, max(32 << 20, int((io_bytes + wb_bytes) * 2)))

    out = pl.pallas_call(
        cls_pooler_kernel,
        out_shape=jax.ShapeDtypeStruct((n_pad, d_out), last_hidden_state.dtype),
        grid_spec=pltpu.PrefetchScalarGridSpec(
            num_scalar_prefetch=0,
            grid=(n_pad // tm,),
            in_specs=[
                pl.BlockSpec((tm, d_in), lambda i: (i, 0)),     # CLS row tile
                pl.BlockSpec((d_in, d_out), lambda i: (0, 0)),  # pooler weight (constant index)
                pl.BlockSpec((1, d_out), lambda i: (0, 0)),     # pooler bias   (constant index)
            ],
            out_specs=pl.BlockSpec((tm, d_out), lambda i: (i, 0)),
        ),
        compiler_params=pltpu.CompilerParams(
            dimension_semantics=("parallel",),
            vmem_limit_bytes=vmem_limit,
        ),
    )(cls, w_pool, b_pool)

    pooled = out[:B]                                      # drop row padding
    return pooled[:, None, :]                             # unsqueeze(1) -> (B, 1, d_out)


def cls_pooler_ref(last_hidden_state, w_pool, b_pool):
    """Pure-JAX reference of pooler_output.unsqueeze(1)."""
    cls = last_hidden_state[:, 0, :].astype(jnp.float32)
    pooled = jnp.tanh(cls @ w_pool.astype(jnp.float32) + b_pool.astype(jnp.float32))
    return pooled[:, None, :].astype(last_hidden_state.dtype)


if __name__ == "__main__":
    # Small shapes consistent with the module: batch=2, seq=8, hidden=128 (lane-dense).
    B, S, D = 2, 8, 128

    key = jax.random.PRNGKey(0)
    kh, kw, kb = jax.random.split(key, 3)
    # Stand-in for self.bert(...)'s last_hidden_state (the encoder itself is external).
    last_hidden_state = jax.random.normal(kh, (B, S, D), jnp.float32)
    # BERT pooler parameters, stored as (in, out) so the kernel computes x @ W.
    w_pool = jax.random.normal(kw, (D, D), jnp.float32) * (1.0 / jnp.sqrt(D))
    b_pool = jax.random.normal(kb, (1, D), jnp.float32) * 0.01

    out = cls_pooler_pallas(last_hidden_state, w_pool, b_pool)
    out = jax.block_until_ready(out)

    ref = cls_pooler_ref(last_hidden_state, w_pool, b_pool)
    assert out.shape == (B, 1, D), out.shape
    assert jnp.allclose(out, ref, atol=1e-5, rtol=1e-5), "mismatch vs reference"

    print("KERNEL_OK")
</pallas_src>

<mosaic_0001>
module attributes {stable_mosaic.version = 11 : i64} {
  func.func @cls_pooler_kernel(%arg0: i32, %arg1: memref<8x128xf32, #tpu.memory_space<vmem>>, %arg2: memref<128x128xf32, #tpu.memory_space<vmem>>, %arg3: memref<1x128xf32, #tpu.memory_space<vmem>>, %arg4: memref<8x128xf32, #tpu.memory_space<vmem>>) attributes {dimension_semantics = [#tpu.dimension_semantics<parallel>], iteration_bounds = array<i64: 1>, scalar_prefetch = 0 : i64, scratch_operands = 0 : i64, tpu.core_type = #tpu.core_type<tc>, window_params = [{transform_indices = @transform_0, window_bounds = array<i64: 8, 128>}, {pipeline_mode = #tpu.pipeline_mode<synchronous>, transform_indices = @transform_1, window_bounds = array<i64: 128, 128>}, {pipeline_mode = #tpu.pipeline_mode<synchronous>, transform_indices = @transform_2, window_bounds = array<i64: 1, 128>}, {transform_indices = @transform_3, window_bounds = array<i64: 8, 128>}]} {
    %c0 = arith.constant 0 : index
    %c0_0 = arith.constant 0 : index
    %0 = vector.load %arg1[%c0, %c0_0] : memref<8x128xf32, #tpu.memory_space<vmem>>, vector<8x128xf32>
    %c0_1 = arith.constant 0 : index
    %c0_2 = arith.constant 0 : index
    %1 = vector.load %arg2[%c0_1, %c0_2] : memref<128x128xf32, #tpu.memory_space<vmem>>, vector<128x128xf32>
    %cst = arith.constant dense<0.000000e+00> : vector<8x128xf32>
    %2 = tpu.matmul %0, %1, %cst {dimension_numbers = #tpu.dot_dimension_numbers<[1], [0], [0], [1], [0, 0, 1, 1], [], []>} : vector<8x128xf32>, vector<128x128xf32>, vector<8x128xf32> -> vector<8x128xf32>
    %c0_3 = arith.constant 0 : index
    %c0_4 = arith.constant 0 : index
    %3 = vector.load %arg3[%c0_3, %c0_4] : memref<1x128xf32, #tpu.memory_space<vmem>>, vector<1x128xf32>
    %4 = vector.broadcast %3 : vector<1x128xf32> to vector<8x128xf32>
    %5 = arith.addf %2, %4 : vector<8x128xf32>
    %6 = math.tanh %5 : vector<8x128xf32>
    %c0_5 = arith.constant 0 : index
    %c0_6 = arith.constant 0 : index
    %7 = vector.load %arg4[%c0_5, %c0_6] : memref<8x128xf32, #tpu.memory_space<vmem>>, vector<8x128xf32>
    tpu.vector_store %arg4[%c0_5, %c0_6], %6 {strides = array<i32>} : memref<8x128xf32, #tpu.memory_space<vmem>>, vector<8x128xf32>,
    return
  }
  func.func @transform_0(%arg0: i32) -> (i32, i32) {
    %c0_i32 = arith.constant 0 : i32
    %c0_i32_0 = arith.constant 0 : i32
    return %arg0, %c0_i32 : i32, i32
  }
  func.func @transform_1(%arg0: i32) -> (i32, i32) {
    %c0_i32 = arith.constant 0 : i32
    %c0_i32_0 = arith.constant 0 : i32
    %c0_i32_1 = arith.constant 0 : i32
    return %c0_i32, %c0_i32_0 : i32, i32
  }
  func.func @transform_2(%arg0: i32) -> (i32, i32) {
    %c0_i32 = arith.constant 0 : i32
    %c0_i32_0 = arith.constant 0 : i32
    %c0_i32_1 = arith.constant 0 : i32
    return %c0_i32, %c0_i32_0 : i32, i32
  }
  func.func @transform_3(%arg0: i32) -> (i32, i32) {
    %c0_i32 = arith.constant 0 : i32
    %c0_i32_0 = arith.constant 0 : i32
    return %arg0, %c0_i32 : i32, i32
  }
}

</mosaic_0001>

<llo_original>
// kernel: tpu_custom_call.1
$region0: #{tpu_custom_call.1}
  #allocation0 [shape = 'u32[]', space=smem, size = 0x4, offset = 0x4, fixed_abs, tag = 'smem constant byte address 0x4 - core index']
  #allocation1 [shape = 'u32[72,128]{1,0:T(1,128)}', space=vmem, size = 0x9000, scoped, tag = 'internal scratch']
  %s0 = inlined_call_operand.hbm [shape: f32[8,128], index: 0, kind: input, shape index: {}]
  %s1 = inlined_call_operand.hbm [shape: f32[128,128], index: 1, kind: input, shape index: {}]
  %s2 = inlined_call_operand.vmem [shape: f32[1,128], index: 2, kind: input, shape index: {}]
  %s3 = inlined_call_operand.hbm [shape: f32[8,128], index: 3, kind: output, shape index: {}]
  %s4 = sld [smem:[#allocation0]]
  $region30: #{tpu_custom_call.1} parent=0
    _
  %s6 = ssub.s32 1, %s4
  %s7 = scalar_select 0, %s6, %s4
  $region1: #{tpu_custom_call.1} parent=0
    #allocation2 [shape = 'u8[4096]{0}', space=vmem, size = 0x1000, scoped, tag = 'input window, operand 0, single buffered']
    #allocation3 [shape = 's32[1]{0}', space=sflag, size = 0x4, scoped, tag = 'scoped memory for tpu_custom_call.1']
    #allocation4 [shape = 's32[1]{0}', space=sflag, size = 0x4, scoped, tag = 'scoped memory for tpu_custom_call.1']
    #allocation5 [shape = 'u8[65536]{0}', space=vmem, size = 0x10000, scoped, tag = 'input window, operand 1, single buffered']
    #allocation6 [shape = 's32[1]{0}', space=sflag, size = 0x4, scoped, tag = 'scoped memory for tpu_custom_call.1']
    #allocation7 [shape = 'u8[4096]{0}', space=vmem, size = 0x1000, scoped, tag = 'output window, operand 0, single buffered']
    %8 = vsyncpa [#allocation3], 0
    %9 = vsyncpa [#allocation6], 0
    %10 = vsyncpa [#allocation4], 0
    // Predicated region
    $region2: #{tpu_custom_call.1} parent=1 // pred_check
      _
    $region3: #{tpu_custom_call.1} parent=1 // pred_check_branch
      %12 = sbr.rel (0) target = $region5
    $region4: #{tpu_custom_call.1} parent=1 // pred_region
      %14 = vsyncadd [#allocation3], 0
      %s16 = sshll.u32 %s0, 4
      %s17 = int_to_ptr.hbm [resolvable:$true] %s16
      %s18 = sshll.u32 [#allocation2], 4
      %s19 = int_to_ptr.vmem [resolvable:$true] %s18
      %21 = dma.hbm_to_vmem [thread:$0]  %s17, 128, %s19, [#allocation3]
    $region5: #{tpu_custom_call.1} parent=1 // pred_fallthru
      _
    // Predicated region
    $region6: #{tpu_custom_call.1} parent=1 // pred_check
      _
    $region7: #{tpu_custom_call.1} parent=1 // pred_check_branch
      %23 = sbr.rel (0) target = $region9
    $region8: #{tpu_custom_call.1} parent=1 // pred_region
      %25 = vsyncadd [#allocation6], 0
      %s26 = sshll.u32 %s1, 4
      %s27 = int_to_ptr.hbm [resolvable:$true] %s26
      %s28 = sshll.u32 [#allocation5], 4
      %s29 = int_to_ptr.vmem [resolvable:$true] %s28
      %34 = dma.hbm_to_vmem [thread:$0]  %s27, 2048, %s29, [#allocation6], 128, 128, 8
    $region9: #{tpu_custom_call.1} parent=1 // pred_fallthru
      _
    // Predicated region
    $region10: #{tpu_custom_call.1} parent=1 // pred_check
      _
    $region11: #{tpu_custom_call.1} parent=1 // pred_check_branch
      %36 = sbr.rel (0) target = $region13
    $region12: #{tpu_custom_call.1} parent=1 // pred_region
      _
    $region13: #{tpu_custom_call.1} parent=1 // pred_fallthru
      _
    // Predicated region
    $region14: #{tpu_custom_call.1} parent=1 // pred_check
      _
    $region15: #{tpu_custom_call.1} parent=1 // pred_check_branch
      %38 = sbr.rel (0) target = $region17
    $region16: #{tpu_custom_call.1} parent=1 // pred_region
      %40 = dma.done [#allocation3], 128
    $region17: #{tpu_custom_call.1} parent=1 // pred_fallthru
      _
    // Predicated region
    $region18: #{tpu_custom_call.1} parent=1 // pred_check
      _
    $region19: #{tpu_custom_call.1} parent=1 // pred_check_branch
      %42 = sbr.rel (0) target = $region21
    $region20: #{tpu_custom_call.1} parent=1 // pred_region
      %44 = dma.done [#allocation6], 2048
    $region21: #{tpu_custom_call.1} parent=1 // pred_fallthru
      _
    %v45 = vld [vmem:[#allocation2] sm:$0xff]
    %v46 = vld [vmem:[#allocation5] sm:$0xff]
    %v47 = vld [vmem:[#allocation5 + $0x8] sm:$0xff]
    %v48 = vld [vmem:[#allocation5 + $0x10] sm:$0xff]
    %v49 = vld [vmem:[#allocation5 + $0x18] sm:$0xff]
    %v50 = vld [vmem:[#allocation5 + $0x20] sm:$0xff]
    %v51 = vld [vmem:[#allocation5 + $0x28] sm:$0xff]
    %v52 = vld [vmem:[#allocation5 + $0x30] sm:$0xff]
    %v53 = vld [vmem:[#allocation5 + $0x38] sm:$0xff]
    %v54 = vld [vmem:[#allocation5 + $0x40] sm:$0xff]
    %v55 = vld [vmem:[#allocation5 + $0x48] sm:$0xff]
    %v56 = vld [vmem:[#allocation5 + $0x50] sm:$0xff]
    %v57 = vld [vmem:[#allocation5 + $0x58] sm:$0xff]
    %v58 = vld [vmem:[#allocation5 + $0x60] sm:$0xff]
    %v59 = vld [vmem:[#allocation5 + $0x68] sm:$0xff]
    %v60 = vld [vmem:[#allocation5 + $0x70] sm:$0xff]
    %v61 = vld [vmem:[#allocation5 + $0x78] sm:$0xff]
    %v62 = vld [vmem:[%s2] sm:$0x1]
    %v64 = vperm.slane %v62, 0
    %66 = vmatpush.msra.mxu0 %v61
    %67 = vmatpush.msra.mxu0 %v60
    %68 = vmatpush.msra.mxu0 %v59
    %69 = vmatpush.msra.mxu0 %v58
    %70 = vmatpush.msra.mxu0 %v57
    %71 = vmatpush.msra.mxu0 %v56
    %72 = vmatpush.msra.mxu0 %v55
    %73 = vmatpush.msra.mxu0 %v54
    %74 = vmatpush.msra.mxu0 %v53
    %75 = vmatpush.msra.mxu0 %v52
    %76 = vmatpush.msra.mxu0 %v51
    %77 = vmatpush.msra.mxu0 %v50
    %78 = vmatpush.msra.mxu0 %v49
    %79 = vmatpush.msra.mxu0 %v48
    %80 = vmatpush.msra.mxu0 %v47
    %81 = vmatpush.msra.mxu0 %v46
    %82 = vmatmul.f32.gmra.mxu0 %v45
    %v83 = vpop.f32.mrf.mxu0
    %v84 = vadd.f32 %v64, %v83
    %85 = vdwg.mxu0
    %v86 = vtanh.pop %v84
    %87 = vst [vmem:[#allocation7] sm:$0xff] %v86
    // Predicated region
    $region22: #{tpu_custom_call.1} parent=1 // pred_check
      _
    $region23: #{tpu_custom_call.1} parent=1 // pred_check_branch
      %89 = sbr.rel (0) target = $region25
    $region24: #{tpu_custom_call.1} parent=1 // pred_region
      %91 = vsyncadd [#allocation4], 0
      %s93 = sshll.u32 [#allocation7], 4
      %s94 = int_to_ptr.vmem [resolvable:$true] %s93
      %s95 = sshll.u32 %s3, 4
      %s96 = int_to_ptr.hbm [resolvable:$true] %s95
      %98 = dma.vmem_to_hbm [thread:$0]  %s94, 128, %s96, [#allocation4]
    $region25: #{tpu_custom_call.1} parent=1 // pred_fallthru
      _
    // Predicated region
    $region26: #{tpu_custom_call.1} parent=1 // pred_check
      _
    $region27: #{tpu_custom_call.1} parent=1 // pred_check_branch
      %100 = sbr.rel (0) target = $region29
    $region28: #{tpu_custom_call.1} parent=1 // pred_region
      %102 = dma.done [#allocation4], 128
    $region29: #{tpu_custom_call.1} parent=1 // pred_fallthru
      _
    %103 = vsyncpa [#allocation3], 1
    %104 = vsyncpa [#allocation6], 1
    %105 = vsyncpa [#allocation4], 1

</llo_original>
